<compile_context>
chip_gen: v6e
topology: v6e:2x2x1
jax: 0.10.0
libtpu: 0.0.40
codegen_flags: <defaults>
</compile_context>

<pallas_src>
import functools

import jax
import jax.numpy as jnp
from jax import lax
from jax.experimental import pallas as pl
from jax.experimental.pallas import tpu as pltpu

LANES = 1024                  # lane width of the 2-D slab (multiple of 128 and of 4)
BOXES_PER_ROW = LANES // 4    # 256 boxes per slab row
ROWS_PER_BLOCK = 256          # 256 x 1024 f32 = 1 MiB payload per grid step
MIN_PALLAS_BOXES = 8192       # below this, plain jnp beats pad + launch overhead


@functools.lru_cache(maxsize=None)
def _roll_shifts():
    """Static pltpu.roll amounts that bring x[l+2] ('fwd2') resp. x[l-2] ('bwd2') to lane l.

    pltpu.roll is expected to follow jnp.roll semantics (out[l] == x[(l - shift) % n]);
    probe the compiled behaviour once (cached) so the kernel is correct either way.
    """
    def probe(x_ref, o_ref):
        o_ref[...] = pltpu.roll(x_ref[...], 2, 1)

    x = lax.broadcasted_iota(jnp.float32, (8, 128), 1)
    got = pl.pallas_call(probe, out_shape=jax.ShapeDtypeStruct((8, 128), jnp.float32))(x)
    if bool(jnp.array_equal(got, jnp.roll(x, 2, axis=1))):
        return LANES - 2, 2    # jnp.roll convention: shift=n-2 -> x[l+2], shift=2 -> x[l-2]
    return 2, LANES - 2        # opposite convention


def _cxcywh2xyxy_kernel(x_ref, o_ref, *, fwd2_shift, bwd2_shift):
    """x_ref / o_ref: (rows_block, LANES) blocks.

    Each slab row is the row-major flattening of LANES//4 boxes, i.e. lanes repeat the
    pattern [cx, cy, w, h, cx, cy, w, h, ...].  Rotation wrap-around only lands on lanes
    where the other select branch wins (LANES % 4 == 0), so it never contaminates a box.
    """
    x = x_ref[...].astype(jnp.float32)            # lane-dense load (+ f32 cast for bf16 / v5e)
    half = x * 0.5
    x1y1 = x - pltpu.roll(half, fwd2_shift, 1)    # cx - w/2, cy - h/2  (valid on cx/cy lanes)
    x2y2 = pltpu.roll(x, bwd2_shift, 1) + half    # cx + w/2, cy + h/2  (valid on w/h  lanes)
    lane = lax.broadcasted_iota(jnp.int32, x.shape, 1)
    is_center = (lane & 3) < 2                    # lane % 4 in {0, 1}  -> cx / cy lane
    o_ref[...] = jnp.where(is_center, x1y1, x2y2).astype(o_ref.dtype)


def _cxcywh2xyxy_jnp(flat):
    cxcy, wh = flat[:, :2], flat[:, 2:]
    return jnp.concatenate([cxcy - 0.5 * wh, cxcy + 0.5 * wh], axis=-1)


def cxcywh2xyxy(cxcywh, *, force_pallas=False):
    """Mirrors cxcywh2xyxy.forward: (..., 4) cxcywh -> (..., 4) xyxy, dtype preserved."""
    cxcywh = jnp.asarray(cxcywh)
    if cxcywh.shape[-1] != 4:
        raise ValueError("last dim must hold (cx, cy, w, h)")
    out_dtype = (cxcywh.dtype if jnp.issubdtype(cxcywh.dtype, jnp.floating)
                 else jnp.float32)
    orig_shape = cxcywh.shape

    flat = cxcywh.astype(out_dtype).reshape(-1, 4)      # (N, 4) row-major -- free
    n = flat.shape[0]

    if n < MIN_PALLAS_BOXES and not force_pallas:
        # Tiny inputs: launch/pad overhead dwarfs the work; pure XLA is faster.
        return _cxcywh2xyxy_jnp(flat).reshape(orig_shape)

    # Pad N to whole slab rows (256 boxes) and view as a lane-dense 2-D slab
    # (free row-major reshape -- no transpose, no extra HBM pass when already aligned).
    n_pad = ((n + BOXES_PER_ROW - 1) // BOXES_PER_ROW) * BOXES_PER_ROW
    if n_pad != n:
        flat = jnp.pad(flat, ((0, n_pad - n), (0, 0)))
    rows = n_pad // BOXES_PER_ROW
    slab = flat.reshape(rows, LANES)

    # Block row count: multiple of 8 (256) when tiling, or the full row extent when the
    # whole slab fits in one block (legal because it equals the array dim).
    rows_block = ROWS_PER_BLOCK if rows >= ROWS_PER_BLOCK else rows
    grid = (pl.cdiv(rows, rows_block),)

    fwd2_shift, bwd2_shift = _roll_shifts()
    itemsize = jnp.dtype(out_dtype).itemsize

    out_slab = pl.pallas_call(
        functools.partial(_cxcywh2xyxy_kernel,
                          fwd2_shift=fwd2_shift, bwd2_shift=bwd2_shift),
        out_shape=jax.ShapeDtypeStruct((rows, LANES), out_dtype),
        grid=grid,
        in_specs=[pl.BlockSpec((rows_block, LANES), lambda i: (i, 0))],
        out_specs=pl.BlockSpec((rows_block, LANES), lambda i: (i, 0)),
        compiler_params=pltpu.CompilerParams(
            dimension_semantics=("parallel",)),
        cost_estimate=pl.CostEstimate(
            flops=6 * n_pad,                       # 2 sub + 2 add + 2 mul per box
            transcendentals=0,
            bytes_accessed=2 * 4 * n_pad * itemsize),
    )(slab)

    xyxy = out_slab.reshape(n_pad, 4)
    if n_pad != n:
        xyxy = xyxy[:n]
    return xyxy.reshape(orig_shape)


if __name__ == "__main__":
    key = jax.random.PRNGKey(0)

    def make_boxes(k, n):
        k1, k2 = jax.random.split(k)
        cxcy = jax.random.uniform(k1, (n, 2), minval=0.0, maxval=640.0)
        wh = jax.random.uniform(k2, (n, 2), minval=1.0, maxval=128.0)
        return jnp.concatenate([cxcy, wh], axis=-1).astype(jnp.float32)

    def ref(b):
        return jnp.concatenate([b[..., :2] - 0.5 * b[..., 2:],
                                b[..., :2] + 0.5 * b[..., 2:]], axis=-1)

    k0, k1, k2 = jax.random.split(key, 3)

    # 1) Tiny input, (2, 8, 4): fast jnp path, shape/dtype preserved.
    small = make_boxes(k0, 16).reshape(2, 8, 4)
    out_small = jax.block_until_ready(cxcywh2xyxy(small))
    assert out_small.shape == small.shape and out_small.dtype == small.dtype
    assert bool(jnp.allclose(out_small, ref(small), atol=1e-5))

    # 2) Pallas path, single block with row padding (N not a multiple of 256).
    med = make_boxes(k1, 20000)
    out_med = jax.block_until_ready(cxcywh2xyxy(med, force_pallas=True))
    assert out_med.shape == med.shape and out_med.dtype == med.dtype
    assert bool(jnp.allclose(out_med, ref(med), atol=1e-5))

    # 3) Pallas path, multi-block grid with a partial final block.
    big = make_boxes(k2, 70000)
    out_big = jax.block_until_ready(cxcywh2xyxy(big))
    assert out_big.shape == big.shape and out_big.dtype == big.dtype
    assert bool(jnp.allclose(out_big, ref(big), atol=1e-5))
    assert bool(jnp.all(out_big[:, 2] >= out_big[:, 0]))
    assert bool(jnp.all(out_big[:, 3] >= out_big[:, 1]))

    print("KERNEL_OK")
</pallas_src>

<mosaic_0001>
module attributes {stable_mosaic.version = 11 : i64} {
  func.func @probe(%arg0: memref<8x128xf32, #tpu.memory_space<vmem>>, %arg1: memref<8x128xf32, #tpu.memory_space<vmem>>) attributes {dimension_semantics = [], scalar_prefetch = 0 : i64, scratch_operands = 0 : i64, tpu.core_type = #tpu.core_type<tc>} {
    %c0 = arith.constant 0 : index
    %c0_0 = arith.constant 0 : index
    %0 = vector.load %arg0[%c0, %c0_0] : memref<8x128xf32, #tpu.memory_space<vmem>>, vector<8x128xf32>
    %c2_i32 = arith.constant 2 : i32
    %1 = tpu.dynamic_rotate %0 by %c2_i32 dim 1 : vector<8x128xf32>, i32 -> vector<8x128xf32>
    %c0_1 = arith.constant 0 : index
    %c0_2 = arith.constant 0 : index
    %2 = vector.load %arg1[%c0_1, %c0_2] : memref<8x128xf32, #tpu.memory_space<vmem>>, vector<8x128xf32>
    tpu.vector_store %arg1[%c0_1, %c0_2], %1 {strides = array<i32>} : memref<8x128xf32, #tpu.memory_space<vmem>>, vector<8x128xf32>,
    return
  }
}

</mosaic_0001>

<llo_original>
// kernel: tpu_custom_call.1
$region0: #{tpu_custom_call.1}
  #allocation0 [shape = 'u32[]', space=smem, size = 0x4, offset = 0x4, fixed_abs, tag = 'smem constant byte address 0x4 - core index']
  #allocation1 [shape = 'u32[144,128]{1,0:T(1,128)}', space=vmem, size = 0x12000, scoped, tag = 'internal scratch']
  %s0 = inlined_call_operand.hbm [shape: f32[8,128], index: 0, kind: input, shape index: {}]
  %s1 = inlined_call_operand.hbm [shape: f32[8,128], index: 1, kind: output, shape index: {}]
  %s2 = sld [smem:[#allocation0]]
  $region18: #{tpu_custom_call.1} parent=0
    _
  %s4 = ssub.s32 1, %s2
  %s5 = scalar_select 0, %s4, %s2
  $region1: #{tpu_custom_call.1} parent=0
    #allocation2 [shape = 'u8[4096]{0}', space=vmem, size = 0x1000, scoped, tag = 'input window, operand 0, single buffered']
    #allocation3 [shape = 's32[1]{0}', space=sflag, size = 0x4, scoped, tag = 'scoped memory for tpu_custom_call.1']
    #allocation4 [shape = 's32[1]{0}', space=sflag, size = 0x4, scoped, tag = 'scoped memory for tpu_custom_call.1']
    #allocation5 [shape = 'u8[4096]{0}', space=vmem, size = 0x1000, scoped, tag = 'output window, operand 0, single buffered']
    %6 = vsyncpa [#allocation3], 0
    %7 = vsyncpa [#allocation4], 0
    // Predicated region
    $region2: #{tpu_custom_call.1} parent=1 // pred_check
      _
    $region3: #{tpu_custom_call.1} parent=1 // pred_check_branch
      %9 = sbr.rel (0) target = $region5
    $region4: #{tpu_custom_call.1} parent=1 // pred_region
      %s11 = ssub.s32 128, 128
      %12 = vsyncadd [#allocation3], %s11
      %s14 = sshll.u32 [#allocation2], 4
      %s15 = int_to_ptr.vmem [resolvable:$true] %s14
      %17 = dma.hbm_to_vmem [thread:$0]  %s0, 128, %s15, [#allocation3]
    $region5: #{tpu_custom_call.1} parent=1 // pred_fallthru
      _
    // Predicated region
    $region6: #{tpu_custom_call.1} parent=1 // pred_check
      _
    $region7: #{tpu_custom_call.1} parent=1 // pred_check_branch
      %19 = sbr.rel (0) target = $region9
    $region8: #{tpu_custom_call.1} parent=1 // pred_region
      %20 = dma.done [#allocation3], 128
    $region9: #{tpu_custom_call.1} parent=1 // pred_fallthru
      _
    %v21 = vld [vmem:[#allocation2] sm:$0xff]
    %22 = vrot.lane.b32.xlu0 %v21, 2
    %v23 = vpop.permute.xlu0 %22
    %24 = vst [vmem:[#allocation5] sm:$0xff] %v23
    // Predicated region
    $region10: #{tpu_custom_call.1} parent=1 // pred_check
      _
    $region11: #{tpu_custom_call.1} parent=1 // pred_check_branch
      %26 = sbr.rel (0) target = $region13
    $region12: #{tpu_custom_call.1} parent=1 // pred_region
      %s28 = ssub.s32 128, 128
      %29 = vsyncadd [#allocation4], %s28
      %s31 = sshll.u32 [#allocation5], 4
      %s32 = int_to_ptr.vmem [resolvable:$true] %s31
      %34 = dma.vmem_to_hbm [thread:$0]  %s32, 128, %s1, [#allocation4]
    $region13: #{tpu_custom_call.1} parent=1 // pred_fallthru
      _
    // Predicated region
    $region14: #{tpu_custom_call.1} parent=1 // pred_check
      _
    $region15: #{tpu_custom_call.1} parent=1 // pred_check_branch
      %36 = sbr.rel (0) target = $region17
    $region16: #{tpu_custom_call.1} parent=1 // pred_region
      %37 = dma.done [#allocation4], 128
    $region17: #{tpu_custom_call.1} parent=1 // pred_fallthru
      _
    %38 = vsyncpa [#allocation3], 1
    %39 = vsyncpa [#allocation4], 1

</llo_original>
